<compile_context>
chip_gen: v7x
topology: tpu7x:2x2x1
jax: 0.10.0
libtpu: 0.0.40
codegen_flags: <defaults>
</compile_context>

<pallas_src>
import functools

import jax
import jax.numpy as jnp
from jax.experimental import pallas as pl
from jax.experimental.pallas import tpu as pltpu


def _vmem_capacity_bytes():
    """Per-core VMEM capacity; conservative (v7x-sized) fallback."""
    try:
        cap = getattr(pltpu.get_tpu_info(), "vmem_capacity_bytes", None)
        if cap:
            return int(cap)
    except Exception:
        pass
    return 64 << 20


_VMEM_CAP = _vmem_capacity_bytes()
# Leave headroom for Mosaic scratch: ~48 MiB on v7x (64 MiB), ~96 MiB on v5e/v6e (128 MiB).
_VMEM_LIMIT = int(_VMEM_CAP * 3 // 4)
# Double-buffered streaming working-set budget for the tiled path (~24 / ~48 MiB).
_TILE_BUDGET = _VMEM_LIMIT // 2
_MIN_BLOCK_BYTES = 512 * 1024          # amortize the ~0.35 us/step grid overhead


def _round_up(x, m):
    return -(-x // m) * m


# -----------------------------------------------------------------------------
# Fused path: whole per-batch-element slab resident in VMEM, grid over N.
# -----------------------------------------------------------------------------
def _ffcse_fused_kernel(xl_ref, xg_ref, w1l_ref, w1g_ref, b1_ref,
                        wl_ref, bl_ref, wg_ref, bg_ref, ol_ref, og_ref):
    xl = xl_ref[...]                                   # (1, CL, HW)
    xg = xg_ref[...]                                   # (1, CG, HW)
    inv_hw = 1.0 / xl.shape[-1]

    # AdaptiveAvgPool2d((1,1)) == mean over spatial (f32 accumulation)
    pooled_l = jnp.sum(xl.astype(jnp.float32), axis=-1) * inv_hw   # (1, CL)
    pooled_g = jnp.sum(xg.astype(jnp.float32), axis=-1) * inv_hw   # (1, CG)

    # conv1 (1x1, bias) on pooled features + ReLU
    h = (jnp.dot(pooled_l, w1l_ref[...], preferred_element_type=jnp.float32)
         + jnp.dot(pooled_g, w1g_ref[...], preferred_element_type=jnp.float32)
         + b1_ref[...])                                # (1, CR)
    h = jnp.maximum(h, 0.0)

    # conv_a2l / conv_a2g (1x1, bias) + sigmoid gates
    sl = jax.nn.sigmoid(
        jnp.dot(h, wl_ref[...], preferred_element_type=jnp.float32) + bl_ref[...])
    sg = jax.nn.sigmoid(
        jnp.dot(h, wg_ref[...], preferred_element_type=jnp.float32) + bg_ref[...])

    ol_ref[...] = (xl * sl[:, :, None]).astype(ol_ref.dtype)
    og_ref[...] = (xg * sg[:, :, None]).astype(og_ref.dtype)


def _ffcse_fused(xl, xg, w1l, w1g, b1, wl, bl, wg, bg):
    N, CL, HW = xl.shape
    CG = xg.shape[1]
    CR = w1l.shape[1]
    C = CL + CG
    x_bytes = (xl.size + xg.size) * jnp.dtype(xl.dtype).itemsize
    return pl.pallas_call(
        _ffcse_fused_kernel,
        grid=(N,),
        out_shape=(jax.ShapeDtypeStruct((N, CL, HW), xl.dtype),
                   jax.ShapeDtypeStruct((N, CG, HW), xg.dtype)),
        in_specs=[
            pl.BlockSpec((1, CL, HW), lambda n: (n, 0, 0)),
            pl.BlockSpec((1, CG, HW), lambda n: (n, 0, 0)),
            pl.BlockSpec((CL, CR), lambda n: (0, 0)),
            pl.BlockSpec((CG, CR), lambda n: (0, 0)),
            pl.BlockSpec((1, CR), lambda n: (0, 0)),
            pl.BlockSpec((CR, CL), lambda n: (0, 0)),
            pl.BlockSpec((1, CL), lambda n: (0, 0)),
            pl.BlockSpec((CR, CG), lambda n: (0, 0)),
            pl.BlockSpec((1, CG), lambda n: (0, 0)),
        ],
        out_specs=(pl.BlockSpec((1, CL, HW), lambda n: (n, 0, 0)),
                   pl.BlockSpec((1, CG, HW), lambda n: (n, 0, 0))),
        compiler_params=pltpu.CompilerParams(
            dimension_semantics=("parallel",),
            vmem_limit_bytes=_VMEM_LIMIT),
        cost_estimate=pl.CostEstimate(
            flops=int(2 * N * C * HW + 4 * N * C * CR),
            transcendentals=int(N * C),
            bytes_accessed=int(2 * x_bytes)),
    )(xl, xg, w1l, w1g, b1, wl, bl, wg, bg)


# -----------------------------------------------------------------------------
# Tiled path, phase 1: fully parallel per-tile partial channel sums.
# -----------------------------------------------------------------------------
def _pool_kernel(xl_ref, xg_ref, sl_ref, sg_ref, *, hw, tile, ragged):
    xl = xl_ref[...].astype(jnp.float32)               # (1, CL, tile)
    xg = xg_ref[...].astype(jnp.float32)               # (1, CG, tile)
    if ragged:
        # Mask lanes past the end of the (padded) last tile; jnp.where (not a
        # multiply) so garbage/NaN reads in the padding cannot leak into sums.
        valid = hw - pl.program_id(1) * tile
        lane = jax.lax.broadcasted_iota(jnp.int32, (1, 1, tile), 2)
        keep = lane < valid
        xl = jnp.where(keep, xl, 0.0)
        xg = jnp.where(keep, xg, 0.0)
    sl_ref[...] = jnp.sum(xl, axis=-1).reshape(sl_ref.shape)   # (1,1,1,CL)
    sg_ref[...] = jnp.sum(xg, axis=-1).reshape(sg_ref.shape)   # (1,1,1,CG)


# -----------------------------------------------------------------------------
# Tiled path, phase 2: streaming lane-dense load-mul-store scale pass.
# -----------------------------------------------------------------------------
def _scale_kernel(xl_ref, xg_ref, gl_ref, gg_ref, ol_ref, og_ref):
    ol_ref[...] = (xl_ref[...] * gl_ref[...]).astype(ol_ref.dtype)
    og_ref[...] = (xg_ref[...] * gg_ref[...]).astype(og_ref.dtype)


def _pick_spatial_tile(hw, c_total, itemsize, c_copies, budget=_TILE_BUDGET):
    """Lane-dense (multiple-of-128) spatial tile; need not divide HW (cdiv grid).

    c_copies: how many full channel sets are streamed per grid step
    (phase 1: 1 = xl+xg inputs; phase 2: 2 = inputs + outputs).
    Working set per step ~= 2 (double buffer) * c_copies * c_total * tile * itemsize.
    """
    hw_pad = _round_up(hw, 128)
    per_lane = 2 * c_copies * c_total * itemsize
    cap = max(128, (budget // per_lane) // 128 * 128)
    floor = _round_up(max(1, -(-_MIN_BLOCK_BYTES // (c_total * itemsize))), 128)
    return int(min(hw_pad, max(cap, floor)))


def _ffcse_tiled(xl, xg, w1l, w1g, b1, wl, bl, wg, bg, debug_hw_tile=None):
    N, CL, HW = xl.shape
    CG = xg.shape[1]
    C = CL + CG
    itemsize = jnp.dtype(xl.dtype).itemsize
    x_bytes = (xl.size + xg.size) * itemsize

    if debug_hw_tile is None:
        thw1 = _pick_spatial_tile(HW, C, itemsize, c_copies=1)   # inputs only
        thw2 = _pick_spatial_tile(HW, C, itemsize, c_copies=2)   # inputs + outputs
    else:
        # Testing-only override (must be a multiple of 128).  Production
        # callers should leave this None so the generation-aware picker
        # chooses >=0.5 MiB lane-dense tiles.
        thw1 = thw2 = int(debug_hw_tile)
    T1 = pl.cdiv(HW, thw1)
    T2 = pl.cdiv(HW, thw2)

    # ---- Phase 1: per-tile partial channel sums (both grid axes parallel) ----
    sums_l, sums_g = pl.pallas_call(
        functools.partial(_pool_kernel, hw=HW, tile=thw1, ragged=(HW % thw1 != 0)),
        grid=(N, T1),
        out_shape=(jax.ShapeDtypeStruct((N, T1, 1, CL), jnp.float32),
                   jax.ShapeDtypeStruct((N, T1, 1, CG), jnp.float32)),
        in_specs=[pl.BlockSpec((1, CL, thw1), lambda n, t: (n, 0, t)),
                  pl.BlockSpec((1, CG, thw1), lambda n, t: (n, 0, t))],
        out_specs=(pl.BlockSpec((1, 1, 1, CL), lambda n, t: (n, t, 0, 0)),
                   pl.BlockSpec((1, 1, 1, CG), lambda n, t: (n, t, 0, 0))),
        compiler_params=pltpu.CompilerParams(
            dimension_semantics=("parallel", "parallel"),
            vmem_limit_bytes=_VMEM_LIMIT),
        cost_estimate=pl.CostEstimate(
            flops=int(N * C * HW),
            transcendentals=0,
            bytes_accessed=int(x_bytes)),
    )(xl, xg)

    # ---- Gate MLP on the (N, C) pooled vector: tiny, plain JAX ----
    pooled = jnp.concatenate(
        [jnp.sum(sums_l, axis=(1, 2)), jnp.sum(sums_g, axis=(1, 2))], axis=1)
    pooled = pooled * (1.0 / HW)                       # (N, C)
    w1 = jnp.concatenate([w1l, w1g], axis=0)           # fused first-layer weight
    h = jnp.maximum(pooled @ w1 + b1, 0.0)             # (N, CR)
    gl = jax.nn.sigmoid(h @ wl + bl)                   # (N, CL)
    gg = jax.nn.sigmoid(h @ wg + bg)                   # (N, CG)
    # Gates laid out once as (N, C, 1): channels on sublanes, unit lane axis,
    # so phase 2 only lane-broadcasts.  Match x dtype off-f32 so the streaming
    # multiply stays narrow on bf16-VPU chips (v6e/v7x).
    if xl.dtype != jnp.float32:
        gl = gl.astype(xl.dtype)
        gg = gg.astype(xg.dtype)
    gl = gl.reshape(N, CL, 1)
    gg = gg.reshape(N, CG, 1)

    # ---- Phase 2: fully parallel streaming scale pass (pure VPU) ----
    out_l, out_g = pl.pallas_call(
        _scale_kernel,
        grid=(N, T2),
        out_shape=(jax.ShapeDtypeStruct((N, CL, HW), xl.dtype),
                   jax.ShapeDtypeStruct((N, CG, HW), xg.dtype)),
        in_specs=[pl.BlockSpec((1, CL, thw2), lambda n, t: (n, 0, t)),
                  pl.BlockSpec((1, CG, thw2), lambda n, t: (n, 0, t)),
                  pl.BlockSpec((1, CL, 1), lambda n, t: (n, 0, 0)),
                  pl.BlockSpec((1, CG, 1), lambda n, t: (n, 0, 0))],
        out_specs=(pl.BlockSpec((1, CL, thw2), lambda n, t: (n, 0, t)),
                   pl.BlockSpec((1, CG, thw2), lambda n, t: (n, 0, t))),
        compiler_params=pltpu.CompilerParams(
            dimension_semantics=("parallel", "parallel"),
            vmem_limit_bytes=_VMEM_LIMIT),
        cost_estimate=pl.CostEstimate(
            flops=int(N * C * HW),
            transcendentals=0,
            bytes_accessed=int(2 * x_bytes)),
    )(xl, xg, gl, gg)
    return out_l, out_g


# -----------------------------------------------------------------------------
# Public wrapper + reference
# -----------------------------------------------------------------------------
def ffcse_block(x_l, x_g, params, *, force_tiled=False, debug_hw_tile=None):
    """x_l: (N, CL, H, W), x_g: (N, CG, H, W)  ->  (out_l, out_g) same shapes."""
    # TODO(synk): in_cl==0 / in_cg==0 degenerate branches (conv_a2l/conv_a2g is
    # None) and the non-tuple input case of the PyTorch module are not modeled.
    w1l, w1g, b1, wl, bl, wg, bg = params
    N, CL, H, W = x_l.shape
    CG = x_g.shape[1]
    HW = H * W

    xl = x_l.reshape(N, CL, HW)
    xg = x_g.reshape(N, CG, HW)

    itemsize = jnp.dtype(x_l.dtype).itemsize
    per_n_elems = (CL + CG) * HW
    # Fused per-grid-step footprint: double-buffered in+out blocks + f32 temps.
    fused_footprint = 4 * per_n_elems * itemsize + 2 * per_n_elems * 4
    if not force_tiled and fused_footprint <= _VMEM_LIMIT:
        out_l, out_g = _ffcse_fused(xl, xg, w1l, w1g, b1, wl, bl, wg, bg)
    else:
        out_l, out_g = _ffcse_tiled(xl, xg, w1l, w1g, b1, wl, bl, wg, bg,
                                    debug_hw_tile=debug_hw_tile)
    return out_l.reshape(N, CL, H, W), out_g.reshape(N, CG, H, W)


def ffcse_ref(x_l, x_g, params):
    """Pure-JAX reference mirroring the PyTorch forward."""
    w1l, w1g, b1, wl, bl, wg, bg = params
    pooled_l = jnp.mean(x_l, axis=(2, 3))
    pooled_g = jnp.mean(x_g, axis=(2, 3))
    h = jnp.maximum(pooled_l @ w1l + pooled_g @ w1g + b1, 0.0)
    sl = jax.nn.sigmoid(h @ wl + bl)
    sg = jax.nn.sigmoid(h @ wg + bg)
    return x_l * sl[:, :, None, None], x_g * sg[:, :, None, None]


def make_params(key, channels, ratio_g, r=16):
    """Deterministic synthetic parameters matching the PyTorch module shapes."""
    in_cg = int(channels * ratio_g)
    in_cl = channels - in_cg
    cr = channels // r
    ks = jax.random.split(key, 6)
    w1 = jax.random.normal(ks[0], (channels, cr), jnp.float32) * 0.1
    b1 = jax.random.normal(ks[1], (1, cr), jnp.float32) * 0.1
    wl = jax.random.normal(ks[2], (cr, in_cl), jnp.float32) * 0.1
    bl = jax.random.normal(ks[3], (1, in_cl), jnp.float32) * 0.1
    wg = jax.random.normal(ks[4], (cr, in_cg), jnp.float32) * 0.1
    bg = jax.random.normal(ks[5], (1, in_cg), jnp.float32) * 0.1
    # split conv1 weight: first in_cl input channels = local, rest = global
    w1l, w1g = w1[:in_cl], w1[in_cl:]
    return (w1l, w1g, b1, wl, bl, wg, bg), in_cl, in_cg


if __name__ == "__main__":
    # channels=64, ratio_g=0.5 -> in_cl=32, in_cg=32, hidden=channels//16=4
    channels, ratio_g = 64, 0.5
    key = jax.random.PRNGKey(0)
    k_par, k1, k2, k3, k4, k5, k6 = jax.random.split(key, 7)
    params, in_cl, in_cg = make_params(k_par, channels, ratio_g)

    def check(x_l, x_g, **kw):
        out_l, out_g = ffcse_block(x_l, x_g, params, **kw)
        jax.block_until_ready((out_l, out_g))
        ref_l, ref_g = ffcse_ref(x_l, x_g, params)
        assert out_l.shape == x_l.shape and out_g.shape == x_g.shape
        assert jnp.allclose(out_l, ref_l, atol=1e-5, rtol=1e-5)
        assert jnp.allclose(out_g, ref_g, atol=1e-5, rtol=1e-5)

    # 1) tiny shape -> fused fast path (grid over N, "parallel" for v7x megacore)
    check(jax.random.normal(k1, (2, in_cl, 8, 8), jnp.float32),
          jax.random.normal(k2, (2, in_cg, 8, 8), jnp.float32))

    # 2) tiled two-phase path with auto-picked lane-dense tiles (HW divisible)
    check(jax.random.normal(k3, (2, in_cl, 32, 32), jnp.float32),
          jax.random.normal(k4, (2, in_cg, 32, 32), jnp.float32),
          force_tiled=True)

    # 3) ragged HW (30*30=900) with a multi-tile grid via the testing-only tile
    #    override (lane-dense 512): exercises the phase-1 mask and the dropped
    #    out-of-bounds writes of phase 2's last tile.
    check(jax.random.normal(k5, (1, in_cl, 30, 30), jnp.float32),
          jax.random.normal(k6, (1, in_cg, 30, 30), jnp.float32),
          force_tiled=True, debug_hw_tile=512)

    print("KERNEL_OK")
</pallas_src>

<mosaic_0001>
module attributes {stable_mosaic.version = 11 : i64} {
  func.func @_ffcse_fused_kernel(%arg0: i32, %arg1: memref<1x32x64xf32, #tpu.memory_space<vmem>>, %arg2: memref<1x32x64xf32, #tpu.memory_space<vmem>>, %arg3: memref<32x4xf32, #tpu.memory_space<vmem>>, %arg4: memref<32x4xf32, #tpu.memory_space<vmem>>, %arg5: memref<1x4xf32, #tpu.memory_space<vmem>>, %arg6: memref<4x32xf32, #tpu.memory_space<vmem>>, %arg7: memref<1x32xf32, #tpu.memory_space<vmem>>, %arg8: memref<4x32xf32, #tpu.memory_space<vmem>>, %arg9: memref<1x32xf32, #tpu.memory_space<vmem>>, %arg10: memref<1x32x64xf32, #tpu.memory_space<vmem>>, %arg11: memref<1x32x64xf32, #tpu.memory_space<vmem>>) attributes {dimension_semantics = [#tpu.dimension_semantics<parallel>], iteration_bounds = array<i64: 2>, scalar_prefetch = 0 : i64, scratch_operands = 0 : i64, tpu.core_type = #tpu.core_type<tc>, window_params = [{transform_indices = @transform_0, window_bounds = array<i64: 1, 32, 64>}, {transform_indices = @transform_1, window_bounds = array<i64: 1, 32, 64>}, {pipeline_mode = #tpu.pipeline_mode<synchronous>, transform_indices = @transform_2, window_bounds = array<i64: 32, 4>}, {pipeline_mode = #tpu.pipeline_mode<synchronous>, transform_indices = @transform_3, window_bounds = array<i64: 32, 4>}, {pipeline_mode = #tpu.pipeline_mode<synchronous>, transform_indices = @transform_4, window_bounds = array<i64: 1, 4>}, {pipeline_mode = #tpu.pipeline_mode<synchronous>, transform_indices = @transform_5, window_bounds = array<i64: 4, 32>}, {pipeline_mode = #tpu.pipeline_mode<synchronous>, transform_indices = @transform_6, window_bounds = array<i64: 1, 32>}, {pipeline_mode = #tpu.pipeline_mode<synchronous>, transform_indices = @transform_7, window_bounds = array<i64: 4, 32>}, {pipeline_mode = #tpu.pipeline_mode<synchronous>, transform_indices = @transform_8, window_bounds = array<i64: 1, 32>}, {transform_indices = @transform_9, window_bounds = array<i64: 1, 32, 64>}, {transform_indices = @transform_10, window_bounds = array<i64: 1, 32, 64>}]} {
    %c0 = arith.constant 0 : index
    %c0_0 = arith.constant 0 : index
    %c0_1 = arith.constant 0 : index
    %0 = vector.load %arg1[%c0, %c0_0, %c0_1] : memref<1x32x64xf32, #tpu.memory_space<vmem>>, vector<1x32x64xf32>
    %c0_2 = arith.constant 0 : index
    %c0_3 = arith.constant 0 : index
    %c0_4 = arith.constant 0 : index
    %1 = vector.load %arg2[%c0_2, %c0_3, %c0_4] : memref<1x32x64xf32, #tpu.memory_space<vmem>>, vector<1x32x64xf32>
    %cst = arith.constant dense<0.000000e+00> : vector<1x32xf32>
    %2 = vector.multi_reduction <add>, %0, %cst [2] : vector<1x32x64xf32> to vector<1x32xf32>
    %cst_5 = arith.constant 1.562500e-02 : f32
    %3 = vector.broadcast %cst_5 : f32 to vector<1x32xf32>
    %4 = arith.mulf %2, %3 : vector<1x32xf32>
    %cst_6 = arith.constant dense<0.000000e+00> : vector<1x32xf32>
    %5 = vector.multi_reduction <add>, %1, %cst_6 [2] : vector<1x32x64xf32> to vector<1x32xf32>
    %cst_7 = arith.constant 1.562500e-02 : f32
    %6 = vector.broadcast %cst_7 : f32 to vector<1x32xf32>
    %7 = arith.mulf %5, %6 : vector<1x32xf32>
    %c0_8 = arith.constant 0 : index
    %c0_9 = arith.constant 0 : index
    %8 = vector.load %arg3[%c0_8, %c0_9] : memref<32x4xf32, #tpu.memory_space<vmem>>, vector<32x4xf32>
    %cst_10 = arith.constant dense<0.000000e+00> : vector<1x4xf32>
    %9 = tpu.matmul %4, %8, %cst_10 {dimension_numbers = #tpu.dot_dimension_numbers<[1], [0], [0], [1], [0, 0, 1, 1], [], []>} : vector<1x32xf32>, vector<32x4xf32>, vector<1x4xf32> -> vector<1x4xf32>
    %c0_11 = arith.constant 0 : index
    %c0_12 = arith.constant 0 : index
    %10 = vector.load %arg4[%c0_11, %c0_12] : memref<32x4xf32, #tpu.memory_space<vmem>>, vector<32x4xf32>
    %cst_13 = arith.constant dense<0.000000e+00> : vector<1x4xf32>
    %11 = tpu.matmul %7, %10, %cst_13 {dimension_numbers = #tpu.dot_dimension_numbers<[1], [0], [0], [1], [0, 0, 1, 1], [], []>} : vector<1x32xf32>, vector<32x4xf32>, vector<1x4xf32> -> vector<1x4xf32>
    %12 = arith.addf %9, %11 : vector<1x4xf32>
    %c0_14 = arith.constant 0 : index
    %c0_15 = arith.constant 0 : index
    %13 = vector.load %arg5[%c0_14, %c0_15] : memref<1x4xf32, #tpu.memory_space<vmem>>, vector<1x4xf32>
    %14 = arith.addf %12, %13 : vector<1x4xf32>
    %cst_16 = arith.constant 0.000000e+00 : f32
    %15 = vector.broadcast %cst_16 : f32 to vector<1x4xf32>
    %16 = arith.maximumf %14, %15 : vector<1x4xf32>
    %c0_17 = arith.constant 0 : index
    %c0_18 = arith.constant 0 : index
    %17 = vector.load %arg6[%c0_17, %c0_18] : memref<4x32xf32, #tpu.memory_space<vmem>>, vector<4x32xf32>
    %cst_19 = arith.constant dense<0.000000e+00> : vector<1x32xf32>
    %18 = tpu.matmul %16, %17, %cst_19 {dimension_numbers = #tpu.dot_dimension_numbers<[1], [0], [0], [1], [0, 0, 1, 1], [], []>} : vector<1x4xf32>, vector<4x32xf32>, vector<1x32xf32> -> vector<1x32xf32>
    %c0_20 = arith.constant 0 : index
    %c0_21 = arith.constant 0 : index
    %19 = vector.load %arg7[%c0_20, %c0_21] : memref<1x32xf32, #tpu.memory_space<vmem>>, vector<1x32xf32>
    %20 = arith.addf %18, %19 : vector<1x32xf32>
    %21 = arith.negf %20 : vector<1x32xf32>
    %22 = math.exp %21 : vector<1x32xf32>
    %cst_22 = arith.constant 1.000000e+00 : f32
    %23 = vector.broadcast %cst_22 : f32 to vector<1x32xf32>
    %24 = arith.addf %23, %22 : vector<1x32xf32>
    %25 = arith.divf %23, %24 : vector<1x32xf32>
    %c0_23 = arith.constant 0 : index
    %c0_24 = arith.constant 0 : index
    %26 = vector.load %arg8[%c0_23, %c0_24] : memref<4x32xf32, #tpu.memory_space<vmem>>, vector<4x32xf32>
    %cst_25 = arith.constant dense<0.000000e+00> : vector<1x32xf32>
    %27 = tpu.matmul %16, %26, %cst_25 {dimension_numbers = #tpu.dot_dimension_numbers<[1], [0], [0], [1], [0, 0, 1, 1], [], []>} : vector<1x4xf32>, vector<4x32xf32>, vector<1x32xf32> -> vector<1x32xf32>
    %c0_26 = arith.constant 0 : index
    %c0_27 = arith.constant 0 : index
    %28 = vector.load %arg9[%c0_26, %c0_27] : memref<1x32xf32, #tpu.memory_space<vmem>>, vector<1x32xf32>
    %29 = arith.addf %27, %28 : vector<1x32xf32>
    %30 = arith.negf %29 : vector<1x32xf32>
    %31 = math.exp %30 : vector<1x32xf32>
    %cst_28 = arith.constant 1.000000e+00 : f32
    %32 = vector.broadcast %cst_28 : f32 to vector<1x32xf32>
    %33 = arith.addf %32, %31 : vector<1x32xf32>
    %34 = arith.divf %32, %33 : vector<1x32xf32>
    %35 = vector.shape_cast %25 : vector<1x32xf32> to vector<1x32x1xf32>
    %36 = vector.broadcast %35 : vector<1x32x1xf32> to vector<1x32x64xf32>
    %37 = arith.mulf %0, %36 : vector<1x32x64xf32>
    %c0_29 = arith.constant 0 : index
    %c0_30 = arith.constant 0 : index
    %c0_31 = arith.constant 0 : index
    %38 = vector.load %arg10[%c0_29, %c0_30, %c0_31] : memref<1x32x64xf32, #tpu.memory_space<vmem>>, vector<1x32x64xf32>
    tpu.vector_store %arg10[%c0_29, %c0_30, %c0_31], %37 {strides = array<i32>} : memref<1x32x64xf32, #tpu.memory_space<vmem>>, vector<1x32x64xf32>,
    %39 = vector.shape_cast %34 : vector<1x32xf32> to vector<1x32x1xf32>
    %40 = vector.broadcast %39 : vector<1x32x1xf32> to vector<1x32x64xf32>
    %41 = arith.mulf %1, %40 : vector<1x32x64xf32>
    %c0_32 = arith.constant 0 : index
    %c0_33 = arith.constant 0 : index
    %c0_34 = arith.constant 0 : index
    %42 = vector.load %arg11[%c0_32, %c0_33, %c0_34] : memref<1x32x64xf32, #tpu.memory_space<vmem>>, vector<1x32x64xf32>
    tpu.vector_store %arg11[%c0_32, %c0_33, %c0_34], %41 {strides = array<i32>} : memref<1x32x64xf32, #tpu.memory_space<vmem>>, vector<1x32x64xf32>,
    return
  }
  func.func @transform_0(%arg0: i32) -> (i32, i32, i32) {
    %c0_i32 = arith.constant 0 : i32
    %c0_i32_0 = arith.constant 0 : i32
    %c0_i32_1 = arith.constant 0 : i32
    return %arg0, %c0_i32, %c0_i32_0 : i32, i32, i32
  }
  func.func @transform_1(%arg0: i32) -> (i32, i32, i32) {
    %c0_i32 = arith.constant 0 : i32
    %c0_i32_0 = arith.constant 0 : i32
    %c0_i32_1 = arith.constant 0 : i32
    return %arg0, %c0_i32, %c0_i32_0 : i32, i32, i32
  }
  func.func @transform_2(%arg0: i32) -> (i32, i32) {
    %c0_i32 = arith.constant 0 : i32
    %c0_i32_0 = arith.constant 0 : i32
    %c0_i32_1 = arith.constant 0 : i32
    return %c0_i32, %c0_i32_0 : i32, i32
  }
  func.func @transform_3(%arg0: i32) -> (i32, i32) {
    %c0_i32 = arith.constant 0 : i32
    %c0_i32_0 = arith.constant 0 : i32
    %c0_i32_1 = arith.constant 0 : i32
    return %c0_i32, %c0_i32_0 : i32, i32
  }
  func.func @transform_4(%arg0: i32) -> (i32, i32) {
    %c0_i32 = arith.constant 0 : i32
    %c0_i32_0 = arith.constant 0 : i32
    %c0_i32_1 = arith.constant 0 : i32
    return %c0_i32, %c0_i32_0 : i32, i32
  }
  func.func @transform_5(%arg0: i32) -> (i32, i32) {
    %c0_i32 = arith.constant 0 : i32
    %c0_i32_0 = arith.constant 0 : i32
    %c0_i32_1 = arith.constant 0 : i32
    return %c0_i32, %c0_i32_0 : i32, i32
  }
  func.func @transform_6(%arg0: i32) -> (i32, i32) {
    %c0_i32 = arith.constant 0 : i32
    %c0_i32_0 = arith.constant 0 : i32
    %c0_i32_1 = arith.constant 0 : i32
    return %c0_i32, %c0_i32_0 : i32, i32
  }
  func.func @transform_7(%arg0: i32) -> (i32, i32) {
    %c0_i32 = arith.constant 0 : i32
    %c0_i32_0 = arith.constant 0 : i32
    %c0_i32_1 = arith.constant 0 : i32
    return %c0_i32, %c0_i32_0 : i32, i32
  }
  func.func @transform_8(%arg0: i32) -> (i32, i32) {
    %c0_i32 = arith.constant 0 : i32
    %c0_i32_0 = arith.constant 0 : i32
    %c0_i32_1 = arith.constant 0 : i32
    return %c0_i32, %c0_i32_0 : i32, i32
  }
  func.func @transform_9(%arg0: i32) -> (i32, i32, i32) {
    %c0_i32 = arith.constant 0 : i32
    %c0_i32_0 = arith.constant 0 : i32
    %c0_i32_1 = arith.constant 0 : i32
    return %arg0, %c0_i32, %c0_i32_0 : i32, i32, i32
  }
  func.func @transform_10(%arg0: i32) -> (i32, i32, i32) {
    %c0_i32 = arith.constant 0 : i32
    %c0_i32_0 = arith.constant 0 : i32
    %c0_i32_1 = arith.constant 0 : i32
    return %arg0, %c0_i32, %c0_i32_0 : i32, i32, i32
  }
}

</mosaic_0001>

<llo_original>
// kernel: tpu_custom_call.1
$region0: #{tpu_custom_call.1}
  #allocation0 [shape = 'u32[]', space=smem, size = 0x4, offset = 0x4, fixed_abs, tag = 'smem constant byte address 0x4 - core index']
  #allocation1 [shape = 'u32[144,128]{1,0:T(1,128)}', space=vmem, size = 0x12000, scoped, tag = 'internal scratch']
  %s0 = inlined_call_operand.vmem [shape: f32[2,32,64], index: 0, kind: input, shape index: {}]
  %s1 = inlined_call_operand.hbm [shape: f32[2,32,64], index: 1, kind: input, shape index: {}]
  %s2 = inlined_call_operand.vmem [shape: f32[32,4], index: 2, kind: input, shape index: {}]
  %s3 = inlined_call_operand.vmem [shape: f32[32,4], index: 3, kind: input, shape index: {}]
  %s4 = inlined_call_operand.vmem [shape: f32[1,4], index: 4, kind: input, shape index: {}]
  %s5 = inlined_call_operand.vmem [shape: f32[4,32], index: 5, kind: input, shape index: {}]
  %s6 = inlined_call_operand.vmem [shape: f32[1,32], index: 6, kind: input, shape index: {}]
  %s7 = inlined_call_operand.vmem [shape: f32[4,32], index: 7, kind: input, shape index: {}]
  %s8 = inlined_call_operand.vmem [shape: f32[1,32], index: 8, kind: input, shape index: {}]
  %s9 = inlined_call_operand.hbm [shape: f32[2,32,64], index: 9, kind: output, shape index: {0}]
  %s10 = inlined_call_operand.hbm [shape: f32[2,32,64], index: 10, kind: output, shape index: {1}]
  %11 = xla_tuple %s9, %s10
  %s12 = sld [smem:[#allocation0]]
  $region81: #{tpu_custom_call.1} parent=0
    _
  %s14 = ssub.s32 1, %s12
  %s15 = scalar_select 0, %s14, %s12
  $region1: #{tpu_custom_call.1} parent=0
    #allocation2 [shape = 'u8[32768]{0}', space=vmem, size = 0x8000, scoped, tag = 'input window, operand 1']
    #allocation3 [shape = 's32[2]{0}', space=sflag, size = 0x8, scoped, tag = 'scoped memory for tpu_custom_call.1']
    #allocation4 [shape = 's32[2]{0}', space=sflag, size = 0x8, scoped, tag = 'scoped memory for tpu_custom_call.1']
    #allocation5 [shape = 'u8[32768]{0}', space=vmem, size = 0x8000, scoped, tag = 'output window, operand 0']
    #allocation6 [shape = 'u8[32768]{0}', space=vmem, size = 0x8000, scoped, tag = 'output window, operand 1']
    #allocation7 [shape = 's32[2]{0}', space=sflag, size = 0x8, scoped, tag = 'scoped memory for tpu_custom_call.1']
    %16 = vsyncpa [#allocation3], 0
    %s17 = scalar_lea.sflag [#allocation3], 1
    %18 = vsyncpa %s17, 0
    %19 = vsyncpa [#allocation4], 0
    %s20 = scalar_lea.sflag [#allocation4], 1
    %21 = vsyncpa %s20, 0
    %22 = vsyncpa [#allocation7], 0
    %s23 = scalar_lea.sflag [#allocation7], 1
    %24 = vsyncpa %s23, 0
    loop: start=0, step=1, limit=4
    $region2: #{tpu_custom_call.1} parent=1 // loop_pre_header
      _
    $region3: #{tpu_custom_call.1} parent=1 // loop_header
      %s26 = sphi 0, %s30
      %p27 = scmp.ge.s32.totalorder %s26, 4
      %s36 = sphi 0, %s38
      %s39 = sphi 0, %s36
      %s40 = sphi 0, %s39
      %s56 = sphi 0, %s40
      %s62 = sphi 0, %s64
      %s65 = sphi 0, %s62
      %s66 = sphi 0, %s65
      %s82 = sphi 0, %s66
      %s86 = sphi 0, %s86
      %s88 = sphi 0, %s86
      %s89 = sphi 0, %s88
      %s103 = sphi 0, %s89
      %s107 = sphi 0, %s107
      %s109 = sphi 0, %s107
      %s110 = sphi 0, %s109
      %s124 = sphi 0, %s110
      %s128 = sphi 0, %s128
      %s130 = sphi 0, %s128
      %s131 = sphi 0, %s130
      %s145 = sphi 0, %s131
      %s149 = sphi 0, %s149
      %s151 = sphi 0, %s149
      %s152 = sphi 0, %s151
      %s166 = sphi 0, %s152
      %s170 = sphi 0, %s170
      %s172 = sphi 0, %s170
      %s173 = sphi 0, %s172
      %s187 = sphi 0, %s173
      %s191 = sphi 0, %s191
      %s193 = sphi 0, %s191
      %s194 = sphi 0, %s193
      %s208 = sphi 0, %s194
      %s212 = sphi 0, %s212
      %s214 = sphi 0, %s212
      %s215 = sphi 0, %s214
      %s229 = sphi 0, %s215
      %s235 = sphi 0, %s237
      %s238 = sphi 0, %s235
      %s239 = sphi 0, %s238
      %s255 = sphi 0, %s239
      %s261 = sphi 0, %s263
      %s264 = sphi 0, %s261
      %s265 = sphi 0, %s264
      %s281 = sphi 0, %s265
    $region4: #{tpu_custom_call.1} parent=1 // loop_header_branch
      %29 = sbr.rel (%p27) target = $region8
    $region5: #{tpu_custom_call.1} parent=1 // loop_body
      %s31 = ssub.s32 %s26, 1
      %s32 = ssub.s32 %s26, 2
      %s33 = sadd.s32 %s26, 1
      %s34 = ssub.s32 %s26, %s33
      %p35 = scmp.eq.s32.totalorder %s34, 0
      %s37 = sadd.s32 %s36, 1
      %s38 = scalar_select %p35, %s36, %s37
      %p41 = pneg %p35
      %p42 = scmp.eq.s32.totalorder %s26, 1
      %p43 = por %p41, %p42
      %p44 = scmp.ne.s32.totalorder %s36, %s39
      %p45 = scmp.eq.s32.totalorder %s26, 0
      %p46 = por %p44, %p45
      %p47 = scmp.ne.s32.totalorder %s36, %s39
      %p48 = scmp.eq.s32.totalorder %s31, 1
      %p49 = por %p47, %p48
      %p50 = scmp.ne.s32.totalorder %s39, %s40
      %p51 = scmp.eq.s32.totalorder %s31, 0
      %p52 = por %p50, %p51
      %p53 = scmp.ne.s32.totalorder %s39, %s40
      %p54 = scmp.eq.s32.totalorder %s32, 1
      %p55 = por %p53, %p54
      %p57 = scmp.ne.s32.totalorder %s40, %s56
      %p58 = scmp.eq.s32.totalorder %s32, 0
      %p59 = por %p57, %p58
      %s60 = ssub.s32 %s26, %s33
      %p61 = scmp.eq.s32.totalorder %s60, 0
      %s63 = sadd.s32 %s62, 1
      %s64 = scalar_select %p61, %s62, %s63
      %p67 = pneg %p61
      %p68 = scmp.eq.s32.totalorder %s26, 1
      %p69 = por %p67, %p68
      %p70 = scmp.ne.s32.totalorder %s62, %s65
      %p71 = scmp.eq.s32.totalorder %s26, 0
      %p72 = por %p70, %p71
      %p73 = scmp.ne.s32.totalorder %s62, %s65
      %p74 = scmp.eq.s32.totalorder %s31, 1
      %p75 = por %p73, %p74
      %p76 = scmp.ne.s32.totalorder %s65, %s66
      %p77 = scmp.eq.s32.totalorder %s31, 0
      %p78 = por %p76, %p77
      %p79 = scmp.ne.s32.totalorder %s65, %s66
      %p80 = scmp.eq.s32.totalorder %s32, 1
      %p81 = por %p79, %p80
      %p83 = scmp.ne.s32.totalorder %s66, %s82
      %p84 = scmp.eq.s32.totalorder %s32, 0
      %p85 = por %p83, %p84
      %s87 = sadd.s32 %s86, 1
      %p90 = scmp.eq.s32.totalorder %s26, 1
      %p91 = scmp.ne.s32.totalorder %s86, %s88
      %p92 = scmp.eq.s32.totalorder %s26, 0
      %p93 = por %p91, %p92
      %p94 = scmp.ne.s32.totalorder %s86, %s88
      %p95 = scmp.eq.s32.totalorder %s31, 1
      %p96 = por %p94, %p95
      %p97 = scmp.ne.s32.totalorder %s88, %s89
      %p98 = scmp.eq.s32.totalorder %s31, 0
      %p99 = por %p97, %p98
      %p100 = scmp.ne.s32.totalorder %s88, %s89
      %p101 = scmp.eq.s32.totalorder %s32, 1
      %p102 = por %p100, %p101
      %p104 = scmp.ne.s32.totalorder %s89, %s103
      %p105 = scmp.eq.s32.totalorder %s32, 0
      %p106 = por %p104, %p105
      %s108 = sadd.s32 %s107, 1
      %p111 = scmp.eq.s32.totalorder %s26, 1
      %p112 = scmp.ne.s32.totalorder %s107, %s109
      %p113 = scmp.eq.s32.totalorder %s26, 0
      %p114 = por %p112, %p113
      %p115 = scmp.ne.s32.totalorder %s107, %s109
      %p116 = scmp.eq.s32.totalorder %s31, 1
      %p117 = por %p115, %p116
      %p118 = scmp.ne.s32.totalorder %s109, %s110
      %p119 = scmp.eq.s32.totalorder %s31, 0
      %p120 = por %p118, %p119
      %p121 = scmp.ne.s32.totalorder %s109, %s110
      %p122 = scmp.eq.s32.totalorder %s32, 1
      %p123 = por %p121, %p122
      %p125 = scmp.ne.s32.totalorder %s110, %s124
      %p126 = scmp.eq.s32.totalorder %s32, 0
      %p127 = por %p125, %p126
      %s129 = sadd.s32 %s128, 1
      %p132 = scmp.eq.s32.totalorder %s26, 1
      %p133 = scmp.ne.s32.totalorder %s128, %s130
      %p134 = scmp.eq.s32.totalorder %s26, 0
      %p135 = por %p133, %p134
      %p136 = scmp.ne.s32.totalorder %s128, %s130
      %p137 = scmp.eq.s32.totalorder %s31, 1
      %p138 = por %p136, %p137
      %p139 = scmp.ne.s32.totalorder %s130, %s131
      %p140 = scmp.eq.s32.totalorder %s31, 0
      %p141 = por %p139, %p140
      %p142 = scmp.ne.s32.totalorder %s130, %s131
      %p143 = scmp.eq.s32.totalorder %s32, 1
      %p144 = por %p142, %p143
      %p146 = scmp.ne.s32.totalorder %s131, %s145
      %p147 = scmp.eq.s32.totalorder %s32, 0
      %p148 = por %p146, %p147
      %s150 = sadd.s32 %s149, 1
      %p153 = scmp.eq.s32.totalorder %s26, 1
      %p154 = scmp.ne.s32.totalorder %s149, %s151
      %p155 = scmp.eq.s32.totalorder %s26, 0
      %p156 = por %p154, %p155
      %p157 = scmp.ne.s32.totalorder %s149, %s151
      %p158 = scmp.eq.s32.totalorder %s31, 1
      %p159 = por %p157, %p158
      %p160 = scmp.ne.s32.totalorder %s151, %s152
      %p161 = scmp.eq.s32.totalorder %s31, 0
      %p162 = por %p160, %p161
      %p163 = scmp.ne.s32.totalorder %s151, %s152
      %p164 = scmp.eq.s32.totalorder %s32, 1
      %p165 = por %p163, %p164
      %p167 = scmp.ne.s32.totalorder %s152, %s166
      %p168 = scmp.eq.s32.totalorder %s32, 0
      %p169 = por %p167, %p168
      %s171 = sadd.s32 %s170, 1
      %p174 = scmp.eq.s32.totalorder %s26, 1
      %p175 = scmp.ne.s32.totalorder %s170, %s172
      %p176 = scmp.eq.s32.totalorder %s26, 0
      %p177 = por %p175, %p176
      %p178 = scmp.ne.s32.totalorder %s170, %s172
      %p179 = scmp.eq.s32.totalorder %s31, 1
      %p180 = por %p178, %p179
      %p181 = scmp.ne.s32.totalorder %s172, %s173
      %p182 = scmp.eq.s32.totalorder %s31, 0
      %p183 = por %p181, %p182
      %p184 = scmp.ne.s32.totalorder %s172, %s173
      %p185 = scmp.eq.s32.totalorder %s32, 1
      %p186 = por %p184, %p185
      %p188 = scmp.ne.s32.totalorder %s173, %s187
      %p189 = scmp.eq.s32.totalorder %s32, 0
      %p190 = por %p188, %p189
      %s192 = sadd.s32 %s191, 1
      %p195 = scmp.eq.s32.totalorder %s26, 1
      %p196 = scmp.ne.s32.totalorder %s191, %s193
      %p197 = scmp.eq.s32.totalorder %s26, 0
      %p198 = por %p196, %p197
      %p199 = scmp.ne.s32.totalorder %s191, %s193
      %p200 = scmp.eq.s32.totalorder %s31, 1
      %p201 = por %p199, %p200
      %p202 = scmp.ne.s32.totalorder %s193, %s194
      %p203 = scmp.eq.s32.totalorder %s31, 0
      %p204 = por %p202, %p203
      %p205 = scmp.ne.s32.totalorder %s193, %s194
      %p206 = scmp.eq.s32.totalorder %s32, 1
      %p207 = por %p205, %p206
      %p209 = scmp.ne.s32.totalorder %s194, %s208
      %p210 = scmp.eq.s32.totalorder %s32, 0
      %p211 = por %p209, %p210
      %s213 = sadd.s32 %s212, 1
      %p216 = scmp.eq.s32.totalorder %s26, 1
      %p217 = scmp.ne.s32.totalorder %s212, %s214
      %p218 = scmp.eq.s32.totalorder %s26, 0
      %p219 = por %p217, %p218
      %p220 = scmp.ne.s32.totalorder %s212, %s214
      %p221 = scmp.eq.s32.totalorder %s31, 1
      %p222 = por %p220, %p221
      %p223 = scmp.ne.s32.totalorder %s214, %s215
      %p224 = scmp.eq.s32.totalorder %s31, 0
      %p225 = por %p223, %p224
      %p226 = scmp.ne.s32.totalorder %s214, %s215
      %p227 = scmp.eq.s32.totalorder %s32, 1
      %p228 = por %p226, %p227
      %p230 = scmp.ne.s32.totalorder %s215, %s229
      %p231 = scmp.eq.s32.totalorder %s32, 0
      %p232 = por %p230, %p231
      %s233 = ssub.s32 %s26, %s33
      %p234 = scmp.eq.s32.totalorder %s233, 0
      %s236 = sadd.s32 %s235, 1
      %s237 = scalar_select %p234, %s235, %s236
      %p240 = pneg %p234
      %p241 = scmp.eq.s32.totalorder %s26, 1
      %p242 = por %p240, %p241
      %p243 = scmp.ne.s32.totalorder %s235, %s238
      %p244 = scmp.eq.s32.totalorder %s26, 0
      %p245 = por %p243, %p244
      %p246 = scmp.ne.s32.totalorder %s235, %s238
      %p247 = scmp.eq.s32.totalorder %s31, 1
      %p248 = por %p246, %p247
      %p249 = scmp.ne.s32.totalorder %s238, %s239
      %p250 = scmp.eq.s32.totalorder %s31, 0
      %p251 = por %p249, %p250
      %p252 = scmp.ne.s32.totalorder %s238, %s239
      %p253 = scmp.eq.s32.totalorder %s32, 1
      %p254 = por %p252, %p253
      %p256 = scmp.ne.s32.totalorder %s239, %s255
      %p257 = scmp.eq.s32.totalorder %s32, 0
      %p258 = por %p256, %p257
      %s259 = ssub.s32 %s26, %s33
      %p260 = scmp.eq.s32.totalorder %s259, 0
      %s262 = sadd.s32 %s261, 1
      %s263 = scalar_select %p260, %s261, %s262
      %p266 = pneg %p260
      %p267 = scmp.eq.s32.totalorder %s26, 1
      %p268 = por %p266, %p267
      %p269 = scmp.ne.s32.totalorder %s261, %s264
      %p270 = scmp.eq.s32.totalorder %s26, 0
      %p271 = por %p269, %p270
      %p272 = scmp.ne.s32.totalorder %s261, %s264
      %p273 = scmp.eq.s32.totalorder %s31, 1
      %p274 = por %p272, %p273
      %p275 = scmp.ne.s32.totalorder %s264, %s265
      %p276 = scmp.eq.s32.totalorder %s31, 0
      %p277 = por %p275, %p276
      %p278 = scmp.ne.s32.totalorder %s264, %s265
      %p279 = scmp.eq.s32.totalorder %s32, 1
      %p280 = por %p278, %p279
      %p282 = scmp.ne.s32.totalorder %s265, %s281
      %p283 = scmp.eq.s32.totalorder %s32, 0
      %p284 = por %p282, %p283
      %p285 = scmp.le.s32.totalorder 1, %s26
      %p286 = scmp.lt.s32.totalorder %s26, 3
      %p287 = pnand %p285, %p286
      %p288 = pneg %p287
      // Predicated region
      $region9: #{tpu_custom_call.1} parent=5 // pred_check
        _
      $region10: #{tpu_custom_call.1} parent=5 // pred_check_branch
        %290 = sbr.rel (%p287) target = $region12
      $region11: #{tpu_custom_call.1} parent=5 // pred_region
        %s291 = ssub.s32 %s26, 1
        // Predicated region
        $region13: #{tpu_custom_call.1} parent=11 // pred_check
          %p292 = pneg %p99
        $region14: #{tpu_custom_call.1} parent=11 // pred_check_branch
          %294 = sbr.rel (%p292) target = $region16
        $region15: #{tpu_custom_call.1} parent=11 // pred_region
          _
        $region16: #{tpu_custom_call.1} parent=11 // pred_fallthru
          _
        // Predicated region
        $region17: #{tpu_custom_call.1} parent=11 // pred_check
          %p295 = pneg %p120
        $region18: #{tpu_custom_call.1} parent=11 // pred_check_branch
          %297 = sbr.rel (%p295) target = $region20
        $region19: #{tpu_custom_call.1} parent=11 // pred_region
          _
        $region20: #{tpu_custom_call.1} parent=11 // pred_fallthru
          _
        // Predicated region
        $region21: #{tpu_custom_call.1} parent=11 // pred_check
          %p298 = pneg %p141
        $region22: #{tpu_custom_call.1} parent=11 // pred_check_branch
          %300 = sbr.rel (%p298) target = $region24
        $region23: #{tpu_custom_call.1} parent=11 // pred_region
          _
        $region24: #{tpu_custom_call.1} parent=11 // pred_fallthru
          _
        // Predicated region
        $region25: #{tpu_custom_call.1} parent=11 // pred_check
          %p301 = pneg %p162
        $region26: #{tpu_custom_call.1} parent=11 // pred_check_branch
          %303 = sbr.rel (%p301) target = $region28
        $region27: #{tpu_custom_call.1} parent=11 // pred_region
          _
        $region28: #{tpu_custom_call.1} parent=11 // pred_fallthru
          _
        // Predicated region
        $region29: #{tpu_custom_call.1} parent=11 // pred_check
          %p304 = pneg %p183
        $region30: #{tpu_custom_call.1} parent=11 // pred_check_branch
          %306 = sbr.rel (%p304) target = $region32
        $region31: #{tpu_custom_call.1} parent=11 // pred_region
          _
        $region32: #{tpu_custom_call.1} parent=11 // pred_fallthru
          _
        // Predicated region
        $region33: #{tpu_custom_call.1} parent=11 // pred_check
          %p307 = pneg %p204
        $region34: #{tpu_custom_call.1} parent=11 // pred_check_branch
          %309 = sbr.rel (%p307) target = $region36
        $region35: #{tpu_custom_call.1} parent=11 // pred_region
          _
        $region36: #{tpu_custom_call.1} parent=11 // pred_fallthru
          _
        // Predicated region
        $region37: #{tpu_custom_call.1} parent=11 // pred_check
          %p310 = pneg %p225
        $region38: #{tpu_custom_call.1} parent=11 // pred_check_branch
          %312 = sbr.rel (%p310) target = $region40
        $region39: #{tpu_custom_call.1} parent=11 // pred_region
          _
        $region40: #{tpu_custom_call.1} parent=11 // pred_fallthru
          _
      $region12: #{tpu_custom_call.1} parent=5 // pred_fallthru
        _
      %p313 = scmp.lt.s32.totalorder %s26, 2
      // Predicated region
      $region41: #{tpu_custom_call.1} parent=5 // pred_check
        %p314 = pneg %p313
      $region42: #{tpu_custom_call.1} parent=5 // pred_check_branch
        %316 = sbr.rel (%p314) target = $region44
      $region43: #{tpu_custom_call.1} parent=5 // pred_region
        // Predicated region
        $region45: #{tpu_custom_call.1} parent=43 // pred_check
          %p317 = pneg %p46
        $region46: #{tpu_custom_call.1} parent=43 // pred_check_branch
          %319 = sbr.rel (%p317) target = $region48
        $region47: #{tpu_custom_call.1} parent=43 // pred_region
          %p320 = scmp.lt.s32.totalorder %s26, 1
          %s321 = scalar_select %p320, %s26, 1
          %s322 = smul.addr %s321, 4
          %s323 = smul.addr %s322, 8
          %s324 = scalar_lea.vmem %s0, %s323
        $region48: #{tpu_custom_call.1} parent=43 // pred_fallthru
          _
        // Predicated region
        $region49: #{tpu_custom_call.1} parent=43 // pred_check
          %p325 = pneg %p72
        $region50: #{tpu_custom_call.1} parent=43 // pred_check_branch
          %327 = sbr.rel (%p325) target = $region52
        $region51: #{tpu_custom_call.1} parent=43 // pred_region
          %s328 = sand.u32 %s62, 1
          %s329 = scalar_lea.sflag [#allocation3], %s328
          %s330 = sand.u32 %s62, 1
          %s331 = smul.addr %s330, 32
          %s332 = scalar_lea.vmem [#allocation2], %s331
          %s334 = ssub.s32 512, 512
          %335 = vsyncadd %s329, %s334
          %s336 = smul.addr %s26, 4
          %s337 = smul.addr %s336, 128
          %s338 = scalar_lea.hbm %s1, %s337
          %s339 = sshll.u32 %s332, 4
          %s340 = int_to_ptr.vmem [resolvable:$true] %s339
          %345 = dma.hbm_to_vmem [thread:$0]  %s338, 512, %s340, %s329, 128, 128, 8
        $region52: #{tpu_custom_call.1} parent=43 // pred_fallthru
          _
      $region44: #{tpu_custom_call.1} parent=5 // pred_fallthru
        _
      %p346 = scmp.le.s32.totalorder 1, %s26
      %p347 = scmp.lt.s32.totalorder %s26, 3
      %p348 = pnand %p346, %p347
      %p349 = pneg %p348
      // Predicated region
      $region53: #{tpu_custom_call.1} parent=5 // pred_check
        _
      $region54: #{tpu_custom_call.1} parent=5 // pred_check_branch
        %351 = sbr.rel (%p348) target = $region56
      $region55: #{tpu_custom_call.1} parent=5 // pred_region
        %s352 = ssub.s32 %s26, 1
        %s353 = sand.u32 %s65, 1
        %s354 = scalar_lea.sflag [#allocation3], %s353
        %s355 = sand.u32 %s65, 1
        %s356 = smul.addr %s355, 32
        %s357 = scalar_lea.vmem [#allocation2], %s356
        // Predicated region
        $region57: #{tpu_custom_call.1} parent=55 // pred_check
          %p358 = pneg %p78
        $region58: #{tpu_custom_call.1} parent=55 // pred_check_branch
          %360 = sbr.rel (%p358) target = $region60
        $region59: #{tpu_custom_call.1} parent=55 // pred_region
          %361 = dma.done %s354, 512
        $region60: #{tpu_custom_call.1} parent=55 // pred_fallthru
          _
        %p362 = scmp.lt.s32.totalorder %s31, 1
        %s363 = scalar_select %p362, %s31, 1
        %s364 = smul.addr %s363, 4
        %s365 = smul.addr %s364, 8
        %s366 = scalar_lea.vmem %s0, %s365
        %p367 = pneg %p52
        %p368 = pneg %p49
        %s369 = sand.u32 %s65, 1
        %s370 = scalar_lea.sflag [#allocation3], %s369
        %s371 = sand.u32 %s65, 1
        %s372 = smul.addr %s371, 32
        %s373 = scalar_lea.vmem [#allocation2], %s372
        %p374 = pneg %p78
        %p375 = pneg %p75
        %p376 = pneg %p99
        %p377 = pneg %p96
        %p378 = pneg %p120
        %p379 = pneg %p117
        %p380 = pneg %p141
        %p381 = pneg %p138
        %p382 = pneg %p162
        %p383 = pneg %p159
        %p384 = pneg %p183
        %p385 = pneg %p180
        %p386 = pneg %p204
        %p387 = pneg %p201
        %p388 = pneg %p225
        %p389 = pneg %p222
        %p390 = pneg %p251
        %p391 = pneg %p248
        %s392 = sand.u32 %s238, 1
        %s393 = scalar_lea.sflag [#allocation4], %s392
        %s394 = sand.u32 %s238, 1
        %s395 = smul.addr %s394, 32
        %s396 = scalar_lea.vmem [#allocation5], %s395
        %p397 = pneg %p277
        %p398 = pneg %p274
        %s399 = sand.u32 %s264, 1
        %s400 = scalar_lea.sflag [#allocation7], %s399
        %s401 = sand.u32 %s264, 1
        %s402 = smul.addr %s401, 32
        %s403 = scalar_lea.vmem [#allocation6], %s402
        %p404 = scmp.lt.s32.totalorder %s31, 1
        %s405 = scalar_select %p404, %s31, 1
        %s406 = smul.addr %s405, 4
        %s407 = smul.addr %s406, 8
        %s408 = scalar_lea.vmem %s0, %s407
        %v409 = vld [vmem:[%s408] sm:$0xff]
        %v410 = vld [vmem:[%s408 + $0x8] sm:$0xff]
        %v411 = vld [vmem:[%s408 + $0x10] sm:$0xff]
        %v412 = vld [vmem:[%s408 + $0x18] sm:$0xff]
        %v413 = vld [vmem:[%s357] sm:$0xff]
        %v414 = vld [vmem:[%s357 + $0x8] sm:$0xff]
        %v415 = vld [vmem:[%s357 + $0x10] sm:$0xff]
        %v416 = vld [vmem:[%s357 + $0x18] sm:$0xff]
        %vm417 = vcmask 523264
        %v418 = vsel %vm417, %v409, 0.0
        %419 = vadd.xlane.f32.xlu0 %v418
        %v420 = vpop.xlane.xlu0 %419
        %v421 = vsel %vm417, %v410, 0.0
        %422 = vadd.xlane.f32.xlu0 %v421
        %v423 = vpop.xlane.xlu0 %422
        %v424 = vsel %vm417, %v411, 0.0
        %425 = vadd.xlane.f32.xlu0 %v424
        %v426 = vpop.xlane.xlu0 %425
        %v427 = vsel %vm417, %v412, 0.0
        %428 = vadd.xlane.f32.xlu0 %v427
        %v429 = vpop.xlane.xlu0 %428
        %v430 = vmul.f32 %v420, 0.015625
        %v431 = vmul.f32 %v423, 0.015625
        %v432 = vmul.f32 %v426, 0.015625
        %v433 = vmul.f32 %v429, 0.015625
        %v434 = vsel %vm417, %v413, 0.0
        %435 = vadd.xlane.f32.xlu0 %v434
        %v436 = vpop.xlane.xlu0 %435
        %v437 = vsel %vm417, %v414, 0.0
        %438 = vadd.xlane.f32.xlu0 %v437
        %v439 = vpop.xlane.xlu0 %438
        %v440 = vsel %vm417, %v415, 0.0
        %441 = vadd.xlane.f32.xlu0 %v440
        %v442 = vpop.xlane.xlu0 %441
        %v443 = vsel %vm417, %v416, 0.0
        %444 = vadd.xlane.f32.xlu0 %v443
        %v445 = vpop.xlane.xlu0 %444
        %v446 = vmul.f32 %v436, 0.015625
        %v447 = vmul.f32 %v439, 0.015625
        %v448 = vmul.f32 %v442, 0.015625
        %v449 = vmul.f32 %v445, 0.015625
        %v450 = vld [vmem:[%s2] sm:$0xff]
        %v451 = vld [vmem:[%s2 + $0x8] sm:$0xff]
        %v452 = vld [vmem:[%s2 + $0x10] sm:$0xff]
        %v453 = vld [vmem:[%s2 + $0x18] sm:$0xff]
        %v454 = vld [vmem:[%s3] sm:$0xff]
        %v455 = vld [vmem:[%s3 + $0x8] sm:$0xff]
        %v456 = vld [vmem:[%s3 + $0x10] sm:$0xff]
        %v457 = vld [vmem:[%s3 + $0x18] sm:$0xff]
        %v462 = vlaneseq
        %v463 = vand.u32 %v462, 127
        %v464 = vlaneseq
        %v465 = vshrl.u32 %v464, 7
        %v466 = vsub.s32 %v463, %v465
        %v467 = vrot.slane %v446, %v466
        %v468 = vadd.s32 %v463, 4294967288
        %v469 = vlaneseq
        %v470 = vshrl.u32 %v469, 7
        %v471 = vsub.s32 %v468, %v470
        %v472 = vrot.slane %v447, %v471
        %vm473 = vcmask 130112
        %v474 = vsel %vm473, %v472, %v467
        %v475 = vadd.s32 %v463, 4294967280
        %v476 = vlaneseq
        %v477 = vshrl.u32 %v476, 7
        %v478 = vsub.s32 %v475, %v477
        %v479 = vrot.slane %v448, %v478
        %vm480 = vcmask 195712
        %v481 = vsel %vm480, %v479, %v474
        %v482 = vadd.s32 %v463, 4294967272
        %v483 = vlaneseq
        %v484 = vshrl.u32 %v483, 7
        %v485 = vsub.s32 %v482, %v484
        %v486 = vrot.slane %v449, %v485
        %vm487 = vcmask 261312
        %v488 = vsel %vm487, %v486, %v481
        %vm489 = vcmask 261120
        %v490 = vsel %vm489, %v488, 0
        %492 = vmatprep.subr.mxu0 0.0
        %493 = vmatpush1.msra.mxu0 %v454
        %494 = vmatprep.subr.mxu0 0.0
        %495 = vmatpush1.msra.mxu0 %v455
        %496 = vmatprep.subr.mxu0 0.0
        %497 = vmatpush1.msra.mxu0 %v456
        %498 = vmatprep.subr.mxu0 0.0
        %499 = vmatpush1.msra.mxu0 %v457
        %500 = vmatprep.subr.mxu0 0.0
        %501 = vmatpush1.msra.mxu0 0.0
        %502 = vmatprep.subr.mxu0 0.0
        %503 = vmatpush1.msra.mxu0 0.0
        %504 = vmatprep.subr.mxu0 0.0
        %505 = vmatpush1.msra.mxu0 0.0
        %506 = vmatprep.subr.mxu0 0.0
        %507 = vmatpush1.msra.mxu0 0.0
        %508 = vmatprep.subr.mxu0 0.0
        %509 = vmatpush1.msra.mxu0 0.0
        %510 = vmatprep.subr.mxu0 0.0
        %511 = vmatpush1.msra.mxu0 0.0
        %512 = vmatprep.subr.mxu0 0.0
        %513 = vmatpush1.msra.mxu0 0.0
        %514 = vmatprep.subr.mxu0 0.0
        %515 = vmatpush1.msra.mxu0 0.0
        %516 = vmatprep.subr.mxu0 0.0
        %517 = vmatpush1.msra.mxu0 0.0
        %518 = vmatprep.subr.mxu0 0.0
        %519 = vmatpush1.msra.mxu0 0.0
        %520 = vmatprep.subr.mxu0 0.0
        %521 = vmatpush1.msra.mxu0 0.0
        %522 = vmatprep.subr.mxu0 0.0
        %523 = vmatpush1.msra.mxu0 0.0
        %524 = vmatprep.subr.mxu0 0.0
        %525 = vmatpush1.msra.mxu0 0.0
        %526 = vmatprep.subr.mxu0 0.0
        %527 = vmatpush1.msra.mxu0 0.0
        %528 = vmatprep.subr.mxu0 0.0
        %529 = vmatpush1.msra.mxu0 0.0
        %530 = vmatprep.subr.mxu0 0.0
        %531 = vmatpush1.msra.mxu0 0.0
        %532 = vmatprep.subr.mxu0 0.0
        %533 = vmatpush1.msra.mxu0 0.0
        %534 = vmatprep.subr.mxu0 0.0
        %535 = vmatpush1.msra.mxu0 0.0
        %536 = vmatprep.subr.mxu0 0.0
        %537 = vmatpush1.msra.mxu0 0.0
        %538 = vmatprep.subr.mxu0 0.0
        %539 = vmatpush1.msra.mxu0 0.0
        %540 = vmatprep.subr.mxu0 0.0
        %541 = vmatpush1.msra.mxu0 0.0
        %542 = vmatprep.subr.mxu0 0.0
        %543 = vmatpush1.msra.mxu0 0.0
        %544 = vmatprep.subr.mxu0 0.0
        %545 = vmatpush1.msra.mxu0 0.0
        %546 = vmatprep.subr.mxu0 0.0
        %547 = vmatpush1.msra.mxu0 0.0
        %548 = vmatprep.subr.mxu0 0.0
        %549 = vmatpush1.msra.mxu0 0.0
        %550 = vmatprep.subr.mxu0 0.0
        %551 = vmatpush1.msra.mxu0 0.0
        %552 = vmatprep.subr.mxu0 0.0
        %553 = vmatpush1.msra.mxu0 0.0
        %554 = vmatprep.subr.mxu0 0.0
        %555 = vmatpush1.msra.mxu0 0.0
        %556 = vmatprep.mubr.f32.mxu0 0.0
        %557 = vmatmul.mubr.f32.gmra.mrb[0].mxu0 %v490
        %v558 = vpop.f32.mrb[0].mxu0
        %v559 = vadd.f32 0.0, %v558
        %v560 = vpop.f32.mrb[0].mxu0
        %561 = vdwg.mxu0
        %v566 = vlaneseq
        %v567 = vshrl.u32 %v566, 7
        %v568 = vsub.s32 %v463, %v567
        %v569 = vrot.slane %v430, %v568
        %v570 = vlaneseq
        %v571 = vshrl.u32 %v570, 7
        %v572 = vsub.s32 %v468, %v571
        %v573 = vrot.slane %v431, %v572
        %v574 = vsel %vm473, %v573, %v569
        %v575 = vlaneseq
        %v576 = vshrl.u32 %v575, 7
        %v577 = vsub.s32 %v475, %v576
        %v578 = vrot.slane %v432, %v577
        %v579 = vsel %vm480, %v578, %v574
        %v580 = vlaneseq
        %v581 = vshrl.u32 %v580, 7
        %v582 = vsub.s32 %v482, %v581
        %v583 = vrot.slane %v433, %v582
        %v584 = vsel %vm487, %v583, %v579
        %v585 = vsel %vm489, %v584, 0
        %587 = vmatprep.subr.mxu0 0.0
        %588 = vmatpush1.msra.mxu0 %v450
        %589 = vmatprep.subr.mxu0 0.0
        %590 = vmatpush1.msra.mxu0 %v451
        %591 = vmatprep.subr.mxu0 0.0
        %592 = vmatpush1.msra.mxu0 %v452
        %593 = vmatprep.subr.mxu0 0.0
        %594 = vmatpush1.msra.mxu0 %v453
        %595 = vmatprep.subr.mxu0 0.0
        %596 = vmatpush1.msra.mxu0 0.0
        %597 = vmatprep.subr.mxu0 0.0
        %598 = vmatpush1.msra.mxu0 0.0
        %599 = vmatprep.subr.mxu0 0.0
        %600 = vmatpush1.msra.mxu0 0.0
        %601 = vmatprep.subr.mxu0 0.0
        %602 = vmatpush1.msra.mxu0 0.0
        %603 = vmatprep.subr.mxu0 0.0
        %604 = vmatpush1.msra.mxu0 0.0
        %605 = vmatprep.subr.mxu0 0.0
        %606 = vmatpush1.msra.mxu0 0.0
        %607 = vmatprep.subr.mxu0 0.0
        %608 = vmatpush1.msra.mxu0 0.0
        %609 = vmatprep.subr.mxu0 0.0
        %610 = vmatpush1.msra.mxu0 0.0
        %611 = vmatprep.subr.mxu0 0.0
        %612 = vmatpush1.msra.mxu0 0.0
        %613 = vmatprep.subr.mxu0 0.0
        %614 = vmatpush1.msra.mxu0 0.0
        %615 = vmatprep.subr.mxu0 0.0
        %616 = vmatpush1.msra.mxu0 0.0
        %617 = vmatprep.subr.mxu0 0.0
        %618 = vmatpush1.msra.mxu0 0.0
        %619 = vmatprep.subr.mxu0 0.0
        %620 = vmatpush1.msra.mxu0 0.0
        %621 = vmatprep.subr.mxu0 0.0
        %622 = vmatpush1.msra.mxu0 0.0
        %623 = vmatprep.subr.mxu0 0.0
        %624 = vmatpush1.msra.mxu0 0.0
        %625 = vmatprep.subr.mxu0 0.0
        %626 = vmatpush1.msra.mxu0 0.0
        %627 = vmatprep.subr.mxu0 0.0
        %628 = vmatpush1.msra.mxu0 0.0
        %629 = vmatprep.subr.mxu0 0.0
        %630 = vmatpush1.msra.mxu0 0.0
        %631 = vmatprep.subr.mxu0 0.0
        %632 = vmatpush1.msra.mxu0 0.0
        %633 = vmatprep.subr.mxu0 0.0
        %634 = vmatpush1.msra.mxu0 0.0
        %635 = vmatprep.subr.mxu0 0.0
        %636 = vmatpush1.msra.mxu0 0.0
        %637 = vmatprep.subr.mxu0 0.0
        %638 = vmatpush1.msra.mxu0 0.0
        %639 = vmatprep.subr.mxu0 0.0
        %640 = vmatpush1.msra.mxu0 0.0
        %641 = vmatprep.subr.mxu0 0.0
        %642 = vmatpush1.msra.mxu0 0.0
        %643 = vmatprep.subr.mxu0 0.0
        %644 = vmatpush1.msra.mxu0 0.0
        %645 = vmatprep.subr.mxu0 0.0
        %646 = vmatpush1.msra.mxu0 0.0
        %647 = vmatprep.subr.mxu0 0.0
        %648 = vmatpush1.msra.mxu0 0.0
        %649 = vmatprep.subr.mxu0 0.0
        %650 = vmatpush1.msra.mxu0 0.0
        %651 = vmatprep.mubr.f32.mxu0 0.0
        %652 = vmatmul.mubr.f32.gmra.mrb[0].mxu0 %v585
        %v653 = vpop.f32.mrb[0].mxu0
        %v654 = vadd.f32 %v559, %v653
        %v655 = vpop.f32.mrb[0].mxu0
        %656 = vdwg.mxu0
        %v657 = vld [vmem:[%s4] sm:$0x1]
        %v658 = vadd.f32 %v654, %v657
        %v659 = vmax.f32 %v658, 0.0
        %v660 = vld [vmem:[%s5] sm:$0xf]
        %v661 = vld [vmem:[%s6] sm:$0x1]
        %vm662 = vcmask 31744
        %v664 = vsel %vm662, %v659, 0
        %vm666 = vcmask 1043456
        %v668 = vsel %vm666, %v660, 0
        %670 = vmatprep.subr.mxu0 0.0
        %671 = vmatpush1.msra.mxu0 %v668
        %672 = vmatprep.subr.mxu0 0.0
        %673 = vmatpush1.msra.mxu0 0.0
        %674 = vmatprep.subr.mxu0 0.0
        %675 = vmatpush1.msra.mxu0 0.0
        %676 = vmatprep.subr.mxu0 0.0
        %677 = vmatpush1.msra.mxu0 0.0
        %678 = vmatprep.subr.mxu0 0.0
        %679 = vmatpush1.msra.mxu0 0.0
        %680 = vmatprep.subr.mxu0 0.0
        %681 = vmatpush1.msra.mxu0 0.0
        %682 = vmatprep.subr.mxu0 0.0
        %683 = vmatpush1.msra.mxu0 0.0
        %684 = vmatprep.subr.mxu0 0.0
        %685 = vmatpush1.msra.mxu0 0.0
        %686 = vmatprep.subr.mxu0 0.0
        %687 = vmatpush1.msra.mxu0 0.0
        %688 = vmatprep.subr.mxu0 0.0
        %689 = vmatpush1.msra.mxu0 0.0
        %690 = vmatprep.subr.mxu0 0.0
        %691 = vmatpush1.msra.mxu0 0.0
        %692 = vmatprep.subr.mxu0 0.0
        %693 = vmatpush1.msra.mxu0 0.0
        %694 = vmatprep.subr.mxu0 0.0
        %695 = vmatpush1.msra.mxu0 0.0
        %696 = vmatprep.subr.mxu0 0.0
        %697 = vmatpush1.msra.mxu0 0.0
        %698 = vmatprep.subr.mxu0 0.0
        %699 = vmatpush1.msra.mxu0 0.0
        %700 = vmatprep.subr.mxu0 0.0
        %701 = vmatpush1.msra.mxu0 0.0
        %702 = vmatprep.subr.mxu0 0.0
        %703 = vmatpush1.msra.mxu0 0.0
        %704 = vmatprep.subr.mxu0 0.0
        %705 = vmatpush1.msra.mxu0 0.0
        %706 = vmatprep.subr.mxu0 0.0
        %707 = vmatpush1.msra.mxu0 0.0
        %708 = vmatprep.subr.mxu0 0.0
        %709 = vmatpush1.msra.mxu0 0.0
        %710 = vmatprep.subr.mxu0 0.0
        %711 = vmatpush1.msra.mxu0 0.0
        %712 = vmatprep.subr.mxu0 0.0
        %713 = vmatpush1.msra.mxu0 0.0
        %714 = vmatprep.subr.mxu0 0.0
        %715 = vmatpush1.msra.mxu0 0.0
        %716 = vmatprep.subr.mxu0 0.0
        %717 = vmatpush1.msra.mxu0 0.0
        %718 = vmatprep.subr.mxu0 0.0
        %719 = vmatpush1.msra.mxu0 0.0
        %720 = vmatprep.subr.mxu0 0.0
        %721 = vmatpush1.msra.mxu0 0.0
        %722 = vmatprep.subr.mxu0 0.0
        %723 = vmatpush1.msra.mxu0 0.0
        %724 = vmatprep.subr.mxu0 0.0
        %725 = vmatpush1.msra.mxu0 0.0
        %726 = vmatprep.subr.mxu0 0.0
        %727 = vmatpush1.msra.mxu0 0.0
        %728 = vmatprep.subr.mxu0 0.0
        %729 = vmatpush1.msra.mxu0 0.0
        %730 = vmatprep.subr.mxu0 0.0
        %731 = vmatpush1.msra.mxu0 0.0
        %732 = vmatprep.subr.mxu0 0.0
        %733 = vmatpush1.msra.mxu0 0.0
        %734 = vmatprep.mubr.f32.mxu0 0.0
        %735 = vmatmul.mubr.f32.gmra.mrb[0].mxu0 %v664
        %v736 = vpop.f32.mrb[0].mxu0
        %v737 = vadd.f32 %v661, %v736
        %v738 = vpop.f32.mrb[0].mxu0
        %739 = vdwg.mxu0
        %v740 = vxor.u32 %v737, 2147483648
        %v741 = vmul.f32 %v740, 1.442695
        %v742 = vpow.pop %v741
        %v743 = vadd.f32 %v742, 1.0
        %v744 = vrcp.pop %v743
        %v745 = vmul.f32 1.0, %v744
        %v746 = vld [vmem:[%s7] sm:$0xf]
        %v747 = vld [vmem:[%s8] sm:$0x1]
        %v749 = vsel %vm666, %v746, 0
        %751 = vmatprep.subr.mxu0 0.0
        %752 = vmatpush1.msra.mxu0 %v749
        %753 = vmatprep.subr.mxu0 0.0
        %754 = vmatpush1.msra.mxu0 0.0
        %755 = vmatprep.subr.mxu0 0.0
        %756 = vmatpush1.msra.mxu0 0.0
        %757 = vmatprep.subr.mxu0 0.0
        %758 = vmatpush1.msra.mxu0 0.0
        %759 = vmatprep.subr.mxu0 0.0
        %760 = vmatpush1.msra.mxu0 0.0
        %761 = vmatprep.subr.mxu0 0.0
        %762 = vmatpush1.msra.mxu0 0.0
        %763 = vmatprep.subr.mxu0 0.0
        %764 = vmatpush1.msra.mxu0 0.0
        %765 = vmatprep.subr.mxu0 0.0
        %766 = vmatpush1.msra.mxu0 0.0
        %767 = vmatprep.subr.mxu0 0.0
        %768 = vmatpush1.msra.mxu0 0.0
        %769 = vmatprep.subr.mxu0 0.0
        %770 = vmatpush1.msra.mxu0 0.0
        %771 = vmatprep.subr.mxu0 0.0
        %772 = vmatpush1.msra.mxu0 0.0
        %773 = vmatprep.subr.mxu0 0.0
        %774 = vmatpush1.msra.mxu0 0.0
        %775 = vmatprep.subr.mxu0 0.0
        %776 = vmatpush1.msra.mxu0 0.0
        %777 = vmatprep.subr.mxu0 0.0
        %778 = vmatpush1.msra.mxu0 0.0
        %779 = vmatprep.subr.mxu0 0.0
        %780 = vmatpush1.msra.mxu0 0.0
        %781 = vmatprep.subr.mxu0 0.0
        %782 = vmatpush1.msra.mxu0 0.0
        %783 = vmatprep.subr.mxu0 0.0
        %784 = vmatpush1.msra.mxu0 0.0
        %785 = vmatprep.subr.mxu0 0.0
        %786 = vmatpush1.msra.mxu0 0.0
        %787 = vmatprep.subr.mxu0 0.0
        %788 = vmatpush1.msra.mxu0 0.0
        %789 = vmatprep.subr.mxu0 0.0
        %790 = vmatpush1.msra.mxu0 0.0
        %791 = vmatprep.subr.mxu0 0.0
        %792 = vmatpush1.msra.mxu0 0.0
        %793 = vmatprep.subr.mxu0 0.0
        %794 = vmatpush1.msra.mxu0 0.0
        %795 = vmatprep.subr.mxu0 0.0
        %796 = vmatpush1.msra.mxu0 0.0
        %797 = vmatprep.subr.mxu0 0.0
        %798 = vmatpush1.msra.mxu0 0.0
        %799 = vmatprep.subr.mxu0 0.0
        %800 = vmatpush1.msra.mxu0 0.0
        %801 = vmatprep.subr.mxu0 0.0
        %802 = vmatpush1.msra.mxu0 0.0
        %803 = vmatprep.subr.mxu0 0.0
        %804 = vmatpush1.msra.mxu0 0.0
        %805 = vmatprep.subr.mxu0 0.0
        %806 = vmatpush1.msra.mxu0 0.0
        %807 = vmatprep.subr.mxu0 0.0
        %808 = vmatpush1.msra.mxu0 0.0
        %809 = vmatprep.subr.mxu0 0.0
        %810 = vmatpush1.msra.mxu0 0.0
        %811 = vmatprep.subr.mxu0 0.0
        %812 = vmatpush1.msra.mxu0 0.0
        %813 = vmatprep.subr.mxu0 0.0
        %814 = vmatpush1.msra.mxu0 0.0
        %815 = vmatprep.mubr.f32.mxu0 0.0
        %816 = vmatmul.mubr.f32.gmra.mrb[0].mxu0 %v664
        %v817 = vpop.f32.mrb[0].mxu0
        %v818 = vadd.f32 %v747, %v817
        %v819 = vpop.f32.mrb[0].mxu0
        %820 = vdwg.mxu0
        %v821 = vxor.u32 %v818, 2147483648
        %v822 = vmul.f32 %v821, 1.442695
        %v823 = vpow.pop %v822
        %v824 = vadd.f32 %v823, 1.0
        %v825 = vrcp.pop %v824
        %v826 = vmul.f32 1.0, %v825
        %v827 = vlaneseq
        %v828 = vshrl.u32 %v827, 7
        %v829 = vsub.s32 0, %v828
        %v830 = vrot.slane %v745, %v829
        %832 = vbcast.lane.b32.xlu0 %v830, 256
        %v833 = vpop.permute.xlu0 %832
        %s835 = sor.u32 256, 8
        %836 = vbcast.lane.b32.xlu0 %v830, %s835
        %v837 = vpop.permute.xlu0 %836
        %s839 = sor.u32 256, 16
        %840 = vbcast.lane.b32.xlu0 %v830, %s839
        %v841 = vpop.permute.xlu0 %840
        %s843 = sor.u32 256, 24
        %844 = vbcast.lane.b32.xlu0 %v830, %s843
        %v845 = vpop.permute.xlu0 %844
        %v846 = vmul.f32 %v409, %v833
        %v847 = vmul.f32 %v410, %v837
        %v848 = vmul.f32 %v411, %v841
        %v849 = vmul.f32 %v412, %v845
        %850 = vst.msk [vmem:[%s396] sm:$0xff] %vm417, %v846
        %851 = vst.msk [vmem:[%s396 + $0x8] sm:$0xff] %vm417, %v847
        %852 = vst.msk [vmem:[%s396 + $0x10] sm:$0xff] %vm417, %v848
        %853 = vst.msk [vmem:[%s396 + $0x18] sm:$0xff] %vm417, %v849
        %v854 = vlaneseq
        %v855 = vshrl.u32 %v854, 7
        %v856 = vsub.s32 0, %v855
        %v857 = vrot.slane %v826, %v856
        %859 = vbcast.lane.b32.xlu0 %v857, 256
        %v860 = vpop.permute.xlu0 %859
        %s862 = sor.u32 256, 8
        %863 = vbcast.lane.b32.xlu0 %v857, %s862
        %v864 = vpop.permute.xlu0 %863
        %s866 = sor.u32 256, 16
        %867 = vbcast.lane.b32.xlu0 %v857, %s866
        %v868 = vpop.permute.xlu0 %867
        %s870 = sor.u32 256, 24
        %871 = vbcast.lane.b32.xlu0 %v857, %s870
        %v872 = vpop.permute.xlu0 %871
        %v873 = vmul.f32 %v413, %v860
        %v874 = vmul.f32 %v414, %v864
        %v875 = vmul.f32 %v415, %v868
        %v876 = vmul.f32 %v416, %v872
        %877 = vst.msk [vmem:[%s403] sm:$0xff] %vm417, %v873
        %878 = vst.msk [vmem:[%s403 + $0x8] sm:$0xff] %vm417, %v874
        %879 = vst.msk [vmem:[%s403 + $0x10] sm:$0xff] %vm417, %v875
        %880 = vst.msk [vmem:[%s403 + $0x18] sm:$0xff] %vm417, %v876
        %s881 = sand.u32 %s238, 1
        %s882 = scalar_lea.sflag [#allocation4], %s881
        %s883 = sand.u32 %s238, 1
        %s884 = smul.addr %s883, 32
        %s885 = scalar_lea.vmem [#allocation5], %s884
        %s886 = sand.u32 %s264, 1
        %s887 = scalar_lea.sflag [#allocation7], %s886
        %s888 = sand.u32 %s264, 1
        %s889 = smul.addr %s888, 32
        %s890 = scalar_lea.vmem [#allocation6], %s889
        // Predicated region
        $region61: #{tpu_custom_call.1} parent=55 // pred_check
          %p891 = pneg %p248
        $region62: #{tpu_custom_call.1} parent=55 // pred_check_branch
          %893 = sbr.rel (%p891) target = $region64
        $region63: #{tpu_custom_call.1} parent=55 // pred_region
          %s895 = ssub.s32 512, 512
          %896 = vsyncadd %s882, %s895
          %s897 = smul.addr %s31, 4
          %s898 = smul.addr %s897, 128
          %s899 = scalar_lea.hbm %s9, %s898
          %s900 = sshll.u32 %s885, 4
          %s901 = int_to_ptr.vmem [resolvable:$true] %s900
          %906 = dma.vmem_to_hbm [thread:$0]  %s901, 512, %s899, %s882, 128, 128, 8
        $region64: #{tpu_custom_call.1} parent=55 // pred_fallthru
          _
        // Predicated region
        $region65: #{tpu_custom_call.1} parent=55 // pred_check
          %p907 = pneg %p274
        $region66: #{tpu_custom_call.1} parent=55 // pred_check_branch
          %909 = sbr.rel (%p907) target = $region68
        $region67: #{tpu_custom_call.1} parent=55 // pred_region
          %s911 = ssub.s32 512, 512
          %912 = vsyncadd %s887, %s911
          %s913 = smul.addr %s31, 4
          %s914 = smul.addr %s913, 128
          %s915 = scalar_lea.hbm %s10, %s914
          %s916 = sshll.u32 %s890, 4
          %s917 = int_to_ptr.vmem [resolvable:$true] %s916
          %922 = dma.vmem_to_hbm [thread:$0]  %s917, 512, %s915, %s887, 128, 128, 8
        $region68: #{tpu_custom_call.1} parent=55 // pred_fallthru
          _
      $region56: #{tpu_custom_call.1} parent=5 // pred_fallthru
        _
      %p923 = scmp.le.s32.totalorder 2, %s26
      // Predicated region
      $region69: #{tpu_custom_call.1} parent=5 // pred_check
        %p924 = pneg %p923
      $region70: #{tpu_custom_call.1} parent=5 // pred_check_branch
        %926 = sbr.rel (%p924) target = $region72
      $region71: #{tpu_custom_call.1} parent=5 // pred_region
        %s927 = ssub.s32 %s26, 2
        // Predicated region
        $region73: #{tpu_custom_call.1} parent=71 // pred_check
          %p928 = pneg %p254
        $region74: #{tpu_custom_call.1} parent=71 // pred_check_branch
          %930 = sbr.rel (%p928) target = $region76
        $region75: #{tpu_custom_call.1} parent=71 // pred_region
          %s931 = sand.u32 %s239, 1
          %s932 = scalar_lea.sflag [#allocation4], %s931
          %s933 = sand.u32 %s239, 1
          %s934 = smul.addr %s933, 32
          %s935 = scalar_lea.vmem [#allocation5], %s934
          %936 = dma.done %s932, 512
        $region76: #{tpu_custom_call.1} parent=71 // pred_fallthru
          _
        // Predicated region
        $region77: #{tpu_custom_call.1} parent=71 // pred_check
          %p937 = pneg %p280
        $region78: #{tpu_custom_call.1} parent=71 // pred_check_branch
          %939 = sbr.rel (%p937) target = $region80
        $region79: #{tpu_custom_call.1} parent=71 // pred_region
          %s940 = sand.u32 %s265, 1
          %s941 = scalar_lea.sflag [#allocation7], %s940
          %s942 = sand.u32 %s265, 1
          %s943 = smul.addr %s942, 32
          %s944 = scalar_lea.vmem [#allocation6], %s943
          %945 = dma.done %s941, 512
        $region80: #{tpu_custom_call.1} parent=71 // pred_fallthru
          _
      $region72: #{tpu_custom_call.1} parent=5 // pred_fallthru
        _
    $region6: #{tpu_custom_call.1} parent=1 // loop_footer
      %s30 = sadd.s32 1, %s26
    $region7: #{tpu_custom_call.1} parent=1 // loop_footer_branch
      %25 = sbr.rel target = $region3
    $region8: #{tpu_custom_call.1} parent=1 // loop_exit
      _
    %946 = vsyncpa [#allocation3], 1
    %s947 = scalar_lea.sflag [#allocation3], 1
    %948 = vsyncpa %s947, 1
    %949 = vsyncpa [#allocation4], 1
    %s950 = scalar_lea.sflag [#allocation4], 1
    %951 = vsyncpa %s950, 1
    %952 = vsyncpa [#allocation7], 1
    %s953 = scalar_lea.sflag [#allocation7], 1
    %954 = vsyncpa %s953, 1

</llo_original>
